<compile_context>
chip_gen: v7x
topology: tpu7x:2x2x1
jax: 0.10.0
libtpu: 0.0.40
codegen_flags: <defaults>
</compile_context>

<pallas_src>
import functools

import numpy as np
import jax
import jax.numpy as jnp
from jax.experimental import pallas as pl
from jax.experimental.pallas import tpu as pltpu


# ----------------------------------------------------------------------------
# Static model dimensions
# ----------------------------------------------------------------------------
POKE_ENC_IN = 19 + 7 + 1             # 27
POKE_ENC_HID = 16
NUM_POKE = 6
INPUT_DIM = 288
OUTPUT_DIM = 22
OUT_PAD = 128                        # lane-dense padded head width
PREFIX = 4 + 4 * 19 + 1 + 7          # 88 features before the encoded-pokemon block
POKE_BLOCK = NUM_POKE * POKE_ENC_IN  # 162
SUFFIX_START = PREFIX + POKE_BLOCK   # 250
DEFAULT_BATCH_TILE = 512             # rows per grid step (multiple of 8, VMEM-safe
                                     # on v5e/v6e/v7x at the default scoped limit)


def _round_up(n, m):
    return ((n + m - 1) // m) * m


# ----------------------------------------------------------------------------
# The single fused Pallas kernel (one batch tile per grid step)
# ----------------------------------------------------------------------------
def _fused_forward_kernel(x_ref,
                          e1w_ref, e1b_ref, e2w_ref, e2b_ref,
                          w0_ref, b0_ref,
                          *rest, num_layers):
    if num_layers > 0:
        ws_ref, bs_ref, lastw_ref, lastb_ref, o_ref = rest
    else:
        ws_ref = bs_ref = None
        lastw_ref, lastb_ref, o_ref = rest

    f32 = jnp.float32
    bf16 = jnp.bfloat16

    def layer_norm(h):
        # Two-pass stats (matches torch.nn.LayerNorm; affine folded into the
        # following Linear at parameter-prep time).
        mean = jnp.mean(h, axis=-1, keepdims=True)
        c = h - mean
        var = jnp.mean(c * c, axis=-1, keepdims=True)
        return c * jax.lax.rsqrt(var + 1e-5)

    x = x_ref[...].astype(f32)                                             # (TB, 288)

    # Pokemon encoder as block-diagonal matmuls, patched into the feature vector:
    #   h1[:, 16p:16p+16]  = relu(raw_poke_p @ W1 + b1)
    #   enc[:, 88+27p:...] = h1_p @ W2 + b2 ; zeros elsewhere
    #   feat = (raw outside the pokemon block) + enc
    h1 = jnp.dot(x.astype(bf16), e1w_ref[...],
                 preferred_element_type=f32) + e1b_ref[...]                # (TB, 96)
    h1 = jnp.maximum(h1, 0.0)
    enc = jnp.dot(h1.astype(bf16), e2w_ref[...],
                  preferred_element_type=f32) + e2b_ref[...]               # (TB, 288)

    lane = jax.lax.broadcasted_iota(jnp.int32, x.shape, dimension=1)
    keep = jnp.logical_or(lane < PREFIX, lane >= SUFFIX_START)
    feat = jnp.where(keep, x, 0.0) + enc                                   # (TB, 288)

    # Trunk: (LayerNorm -> Linear -> ReLU) x (num_layers + 1), statically unrolled.
    h = layer_norm(feat)
    h = jnp.dot(h.astype(bf16), w0_ref[...],
                preferred_element_type=f32) + b0_ref[...]
    h = jnp.maximum(h, 0.0)
    for layer in range(num_layers):
        h = layer_norm(h)
        h = jnp.dot(h.astype(bf16), ws_ref[layer],
                    preferred_element_type=f32) + bs_ref[layer]
        h = jnp.maximum(h, 0.0)

    # Final head (zero-padded to 128 output lanes -> lane-dense store).
    o_ref[...] = jnp.dot(h.astype(bf16), lastw_ref[...],
                         preferred_element_type=f32) + lastb_ref[...]


def fused_forward(raw_features, fp, *, num_layers,
                  batch_tile=DEFAULT_BATCH_TILE, return_padded=False):
    bsz = raw_features.shape[0]
    tile = min(batch_tile, _round_up(bsz, 8))
    padded = _round_up(bsz, tile)
    if padded != bsz:
        raw_features = jnp.pad(raw_features, ((0, padded - bsz), (0, 0)))

    params = [fp["e1w"], fp["e1b"], fp["e2w"], fp["e2b"], fp["w0"], fp["b0"]]
    if num_layers > 0:
        params += [fp["ws"], fp["bs"]]
    params += [fp["lastw"], fp["lastb"]]

    def resident_spec(arr):
        nd = arr.ndim
        return pl.BlockSpec(arr.shape, lambda i, _nd=nd: (0,) * _nd)

    in_specs = [pl.BlockSpec((tile, INPUT_DIM), lambda i: (i, 0))]
    in_specs += [resident_spec(p) for p in params]

    out = pl.pallas_call(
        functools.partial(_fused_forward_kernel, num_layers=num_layers),
        out_shape=jax.ShapeDtypeStruct((padded, OUT_PAD), jnp.float32),
        grid=(padded // tile,),
        in_specs=in_specs,
        out_specs=pl.BlockSpec((tile, OUT_PAD), lambda i: (i, 0)),
        compiler_params=pltpu.CompilerParams(
            dimension_semantics=("parallel",)),
    )(raw_features, *params)

    if return_padded:
        return out
    return out[:bsz, :OUTPUT_DIM]


# ----------------------------------------------------------------------------
# Parameter init (shapes match the PyTorch __init__) + one-time packing
# ----------------------------------------------------------------------------
def init_params(key, hidden_dim, num_layers):
    def lin(k, fan_in, fan_out):
        bound = 1.0 / jnp.sqrt(fan_in)
        kw, kb = jax.random.split(k)
        w = jax.random.uniform(kw, (fan_in, fan_out), jnp.float32, -bound, bound)
        b = jax.random.uniform(kb, (fan_out,), jnp.float32, -bound, bound)
        return w, b

    keys = jax.random.split(key, 4 + num_layers)
    params = {}
    # pokemon encoder: Linear(27,16) -> ReLU -> Linear(16,27)
    params["pe_w1"], params["pe_b1"] = lin(keys[0], POKE_ENC_IN, POKE_ENC_HID)
    params["pe_w2"], params["pe_b2"] = lin(keys[1], POKE_ENC_HID, POKE_ENC_IN)
    # trunk: LayerNorm(288) + Linear(288,H) + ReLU, then num_layers blocks
    params["ln_g"] = [jnp.ones((INPUT_DIM,), jnp.float32)]
    params["ln_b"] = [jnp.zeros((INPUT_DIM,), jnp.float32)]
    params["ws"], params["bs"] = [], []
    w, b = lin(keys[2], INPUT_DIM, hidden_dim)
    params["ws"].append(w)
    params["bs"].append(b)
    for i in range(num_layers):
        params["ln_g"].append(jnp.ones((hidden_dim,), jnp.float32))
        params["ln_b"].append(jnp.zeros((hidden_dim,), jnp.float32))
        w, b = lin(keys[3 + i], hidden_dim, hidden_dim)
        params["ws"].append(w)
        params["bs"].append(b)
    # last layer: zero-initialized (as in the PyTorch module)
    params["last_w"] = jnp.zeros((hidden_dim, OUTPUT_DIM), jnp.float32)
    params["last_b"] = jnp.zeros((OUTPUT_DIM,), jnp.float32)
    return params


def prepare_fused_params(params, num_layers):
    """One-time packing (run outside jit): block-diagonal encoder weights,
    LayerNorm affine folded into the following Linear, bf16 matmul weights,
    zero-padded lane-dense head."""
    hidden = params["ws"][0].shape[1]
    bf16 = jnp.bfloat16

    def block_diag(w, n):
        fi, fo = w.shape
        m = jnp.zeros((n * fi, n * fo), jnp.float32)
        for p in range(n):
            m = m.at[p * fi:(p + 1) * fi, p * fo:(p + 1) * fo].set(w)
        return m

    e1w = jnp.zeros((INPUT_DIM, NUM_POKE * POKE_ENC_HID), jnp.float32)
    e1w = e1w.at[PREFIX:SUFFIX_START, :].set(block_diag(params["pe_w1"], NUM_POKE))
    e1b = jnp.tile(params["pe_b1"], NUM_POKE)[None, :]                     # (1, 96)

    e2w = jnp.zeros((NUM_POKE * POKE_ENC_HID, INPUT_DIM), jnp.float32)
    e2w = e2w.at[:, PREFIX:SUFFIX_START].set(block_diag(params["pe_w2"], NUM_POKE))
    e2b = jnp.zeros((1, INPUT_DIM), jnp.float32)
    e2b = e2b.at[0, PREFIX:SUFFIX_START].set(jnp.tile(params["pe_b2"], NUM_POKE))

    def fold_ln(g, b_ln, w, b_lin):
        # LN(x)*g + b  ->  Linear  ==  LN(x) @ (diag(g)@W) + (b@W + b_lin)
        return w * g[:, None], b_ln @ w + b_lin

    w0, b0 = fold_ln(params["ln_g"][0], params["ln_b"][0],
                     params["ws"][0], params["bs"][0])

    fp = {
        "e1w": e1w.astype(bf16), "e1b": e1b,
        "e2w": e2w.astype(bf16), "e2b": e2b,
        "w0": w0.astype(bf16), "b0": b0[None, :],
        "lastw": jnp.zeros((hidden, OUT_PAD), jnp.float32)
                   .at[:, :OUTPUT_DIM].set(params["last_w"]).astype(bf16),
        "lastb": jnp.zeros((1, OUT_PAD), jnp.float32)
                   .at[0, :OUTPUT_DIM].set(params["last_b"]),
    }
    if num_layers > 0:
        ws_f, bs_f = [], []
        for layer in range(num_layers):
            w, b = fold_ln(params["ln_g"][layer + 1], params["ln_b"][layer + 1],
                           params["ws"][layer + 1], params["bs"][layer + 1])
            ws_f.append(w)
            bs_f.append(b)
        fp["ws"] = jnp.stack(ws_f).astype(bf16)                            # (L, H, H)
        fp["bs"] = jnp.stack(bs_f)[:, None, :]                             # (L, 1, H)
    return fp


# ----------------------------------------------------------------------------
# Field layout for the flat input vector (mirrors field_to_idx usage)
# ----------------------------------------------------------------------------
def make_field_layout():
    f2i = {}
    cur = 0

    def alloc(name, n):
        nonlocal cur
        f2i[name] = list(range(cur, cur + n))
        cur += n

    def alloc_scalar(name):
        nonlocal cur
        f2i[name] = cur
        cur += 1

    alloc("our_pokemon_1_move_powers", 4)
    alloc("our_pokemon_1_move_type_ids", 4)
    alloc("our_pokemon_1_hp_percentage", 1)
    alloc("our_pokemon_1_boosts", 7)
    for i in range(1, 7):
        alloc(f"our_pokemon_{i}_type_ids", 2)
        if i != 1:
            alloc(f"our_pokemon_{i}_hp_percentage", 1)
        alloc_scalar(f"our_pokemon_{i}_status_id")
    alloc("opponent_pokemon_active_type_ids", 2)
    alloc("opponent_pokemon_active_boosts", 7)
    alloc("opponent_pokemon_active_hp_percentage", 1)
    alloc("our_pokemon_1_volatiles", 3)                 # [-3] is used
    alloc("opponent_pokemon_active_volatiles", 3)       # [-3] is used
    alloc("our_side_conditions", 8)                     # [7] is used
    alloc("opponent_side_conditions", 8)                # [7] is used
    alloc_scalar("opponent_pokemon_active_status_id")
    return f2i, cur


# ----------------------------------------------------------------------------
# Feature-construction glue (plain JAX: one-hots, gathers, concat) + forward
# ----------------------------------------------------------------------------
def build_raw_features(batch, f2i):
    if batch.ndim == 1:
        batch = batch[None, :]
    bsz = batch.shape[0]

    def take(cols):
        return batch[:, np.asarray(cols)]

    def one_hot(vals, n):
        return jax.nn.one_hot(vals.astype(jnp.int32), n, dtype=jnp.float32)

    # prefix (width 88)
    move_powers = take(f2i["our_pokemon_1_move_powers"])                       # (B, 4)
    move_types = one_hot(take(f2i["our_pokemon_1_move_type_ids"]), 19)         # (B, 4, 19)
    move_types = move_types.reshape(bsz, 4 * 19)                               # (B, 76)
    hp1 = take(f2i["our_pokemon_1_hp_percentage"])                             # (B, 1)
    boosts1 = take(f2i["our_pokemon_1_boosts"])                                # (B, 7)

    # raw (un-encoded) pokemon block (width 162), vectorized over the 6 pokemon
    type_cols = np.asarray([f2i[f"our_pokemon_{i}_type_ids"] for i in range(1, 7)])
    hp_cols = np.asarray([f2i[f"our_pokemon_{i}_hp_percentage"][0] for i in range(1, 7)])
    status_cols = np.asarray([f2i[f"our_pokemon_{i}_status_id"] for i in range(1, 7)])
    p_types = one_hot(batch[:, type_cols.reshape(-1)], 19)
    p_types = p_types.reshape(bsz, NUM_POKE, 2, 19).sum(axis=2)                # (B, 6, 19)
    p_hp = batch[:, hp_cols][:, :, None]                                       # (B, 6, 1)
    p_status = one_hot(batch[:, status_cols], 7)                               # (B, 6, 7)
    poke_raw = jnp.concatenate([p_types, p_hp, p_status], axis=2)
    poke_raw = poke_raw.reshape(bsz, POKE_BLOCK)                               # (B, 162)

    # suffix (width 38)
    ot = f2i["opponent_pokemon_active_type_ids"]
    opp_types = one_hot(batch[:, ot[0]], 19) + one_hot(batch[:, ot[1]], 19)    # (B, 19)
    opp_boosts = take(f2i["opponent_pokemon_active_boosts"])                   # (B, 7)
    opp_hp = take(f2i["opponent_pokemon_active_hp_percentage"])                # (B, 1)
    misc_cols = np.asarray([
        f2i["our_pokemon_1_volatiles"][-3],
        f2i["opponent_pokemon_active_volatiles"][-3],
        f2i["our_side_conditions"][7],
        f2i["opponent_side_conditions"][7],
    ])
    misc = batch[:, misc_cols]                                                 # (B, 4)
    opp_status = one_hot(batch[:, f2i["opponent_pokemon_active_status_id"]], 7)

    feats = jnp.concatenate(
        [move_powers, move_types, hp1, boosts1, poke_raw,
         opp_types, opp_boosts, opp_hp, misc, opp_status], axis=1)
    assert feats.shape[1] == INPUT_DIM
    return feats


def forward(fused_params, batch, f2i, num_layers):
    if batch.ndim == 1:
        batch = batch[None, :]
    raw = build_raw_features(batch, f2i)
    return fused_forward(raw, fused_params, num_layers=num_layers)


# ----------------------------------------------------------------------------
# Pure-JAX references (used only for self-test in __main__)
# ----------------------------------------------------------------------------
def _ln_ref(x, g, b):
    m = x.mean(-1, keepdims=True)
    v = ((x - m) ** 2).mean(-1, keepdims=True)
    return (x - m) / jnp.sqrt(v + 1e-5) * g + b


def reference_forward(params, raw, last_w, last_b, num_layers, use_bf16):
    """Same math as the module; if use_bf16, round matmul inputs to bf16 the
    way the kernel does (f32 accumulation)."""
    def mm(a, w):
        if use_bf16:
            return jnp.dot(a.astype(jnp.bfloat16), w.astype(jnp.bfloat16),
                           preferred_element_type=jnp.float32)
        return jnp.dot(a, w, preferred_element_type=jnp.float32)

    bsz = raw.shape[0]
    poke = raw[:, PREFIX:SUFFIX_START].reshape(bsz * NUM_POKE, POKE_ENC_IN)
    h = jnp.maximum(mm(poke, params["pe_w1"]) + params["pe_b1"], 0.0)
    enc = (mm(h, params["pe_w2"]) + params["pe_b2"]).reshape(bsz, POKE_BLOCK)
    feat = jnp.concatenate([raw[:, :PREFIX], enc, raw[:, SUFFIX_START:]], axis=1)

    h = feat
    for layer in range(num_layers + 1):
        h = _ln_ref(h, params["ln_g"][layer], params["ln_b"][layer])
        h = jnp.maximum(mm(h, params["ws"][layer]) + params["bs"][layer], 0.0)
    return mm(h, last_w) + last_b


# ----------------------------------------------------------------------------
# Main
# ----------------------------------------------------------------------------
if __name__ == "__main__":
    HIDDEN_DIM = 32      # config.complete_state_hidden_dim
    NUM_LAYERS = 2       # config.num_layers
    BATCH = 2

    f2i, total_fields = make_field_layout()

    key = jax.random.PRNGKey(0)
    k_params, k_cont, k_type, k_stat, k_head = jax.random.split(key, 5)

    params = init_params(k_params, HIDDEN_DIM, NUM_LAYERS)
    fused_params = prepare_fused_params(params, NUM_LAYERS)   # packed once, outside jit

    # Flat input batch; continuous fields ~ U[0,1), id fields hold int-valued floats.
    batch = jax.random.uniform(k_cont, (BATCH, total_fields), dtype=jnp.float32)
    type_cols = (
        list(f2i["our_pokemon_1_move_type_ids"])
        + sum([list(f2i[f"our_pokemon_{i}_type_ids"]) for i in range(1, 7)], [])
        + list(f2i["opponent_pokemon_active_type_ids"])
    )
    status_cols = [f2i[f"our_pokemon_{i}_status_id"] for i in range(1, 7)] + [
        f2i["opponent_pokemon_active_status_id"]
    ]
    batch = batch.at[:, jnp.asarray(type_cols)].set(
        jax.random.randint(k_type, (BATCH, len(type_cols)), 0, 19).astype(jnp.float32))
    batch = batch.at[:, jnp.asarray(status_cols)].set(
        jax.random.randint(k_stat, (BATCH, len(status_cols)), 0, 7).astype(jnp.float32))

    fwd = jax.jit(functools.partial(forward, f2i=f2i, num_layers=NUM_LAYERS))
    out = jax.block_until_ready(fwd(fused_params, batch))

    assert out.shape == (BATCH, OUTPUT_DIM), out.shape
    assert out.dtype == jnp.float32
    # last_layer is zero-initialized in the reference module -> output must be zeros.
    assert bool(jnp.all(out == 0.0))

    # Self-test: swap in a non-zero head (test-only) and compare the fused kernel
    # against pure-JAX references of the same math.
    kw, kb = jax.random.split(k_head)
    test_w = jax.random.uniform(kw, (HIDDEN_DIM, OUTPUT_DIM), jnp.float32, -0.1, 0.1)
    test_b = jax.random.uniform(kb, (OUTPUT_DIM,), jnp.float32, -0.1, 0.1)
    test_fp = dict(fused_params)
    test_fp["lastw"] = (jnp.zeros((HIDDEN_DIM, OUT_PAD), jnp.float32)
                        .at[:, :OUTPUT_DIM].set(test_w).astype(jnp.bfloat16))
    test_fp["lastb"] = jnp.zeros((1, OUT_PAD), jnp.float32).at[0, :OUTPUT_DIM].set(test_b)

    raw = build_raw_features(batch, f2i)
    got = jax.block_until_ready(fused_forward(raw, test_fp, num_layers=NUM_LAYERS))

    # Tight check vs a reference that uses the same bf16-rounded matmul inputs.
    want_bf16 = reference_forward(params, raw, test_w, test_b, NUM_LAYERS, use_bf16=True)
    diff_bf16 = float(jnp.max(jnp.abs(got - want_bf16)))
    assert diff_bf16 < 5e-3, f"fused kernel mismatch vs bf16 reference: {diff_bf16}"

    # Loose sanity check vs the exact f32 reference (bf16 quantization error only).
    want_f32 = reference_forward(params, raw, test_w, test_b, NUM_LAYERS, use_bf16=False)
    diff_f32 = float(jnp.max(jnp.abs(got - want_f32)))
    assert diff_f32 < 0.1 * (1.0 + float(jnp.max(jnp.abs(want_f32)))), (
        f"fused kernel drifted too far from f32 reference: {diff_f32}")

    # Also exercise a batch that needs multiple grid steps / padding.
    big_raw = jnp.tile(raw, (37, 1))                       # 74 rows -> padded to 80
    big_out = jax.block_until_ready(
        fused_forward(big_raw, test_fp, num_layers=NUM_LAYERS, batch_tile=16))
    assert big_out.shape == (74, OUTPUT_DIM)
    assert float(jnp.max(jnp.abs(big_out[:BATCH] - got))) < 1e-5

    print("KERNEL_OK")
</pallas_src>

<mosaic_0001>
module attributes {stable_mosaic.version = 11 : i64} {
  func.func @_fused_forward_kernel(%arg0: i32, %arg1: memref<8x288xf32, #tpu.memory_space<vmem>>, %arg2: memref<288x96xbf16, #tpu.memory_space<vmem>>, %arg3: memref<1x96xf32, #tpu.memory_space<vmem>>, %arg4: memref<96x288xbf16, #tpu.memory_space<vmem>>, %arg5: memref<1x288xf32, #tpu.memory_space<vmem>>, %arg6: memref<288x32xbf16, #tpu.memory_space<vmem>>, %arg7: memref<1x32xf32, #tpu.memory_space<vmem>>, %arg8: memref<2x32x32xbf16, #tpu.memory_space<vmem>>, %arg9: memref<2x1x32xf32, #tpu.memory_space<vmem>>, %arg10: memref<32x128xbf16, #tpu.memory_space<vmem>>, %arg11: memref<1x128xf32, #tpu.memory_space<vmem>>, %arg12: memref<8x128xf32, #tpu.memory_space<vmem>>) attributes {dimension_semantics = [#tpu.dimension_semantics<parallel>], iteration_bounds = array<i64: 1>, scalar_prefetch = 0 : i64, scratch_operands = 0 : i64, tpu.core_type = #tpu.core_type<tc>, window_params = [{transform_indices = @transform_0, window_bounds = array<i64: 8, 288>}, {pipeline_mode = #tpu.pipeline_mode<synchronous>, transform_indices = @transform_1, window_bounds = array<i64: 288, 96>}, {pipeline_mode = #tpu.pipeline_mode<synchronous>, transform_indices = @transform_2, window_bounds = array<i64: 1, 96>}, {pipeline_mode = #tpu.pipeline_mode<synchronous>, transform_indices = @transform_3, window_bounds = array<i64: 96, 288>}, {pipeline_mode = #tpu.pipeline_mode<synchronous>, transform_indices = @transform_4, window_bounds = array<i64: 1, 288>}, {pipeline_mode = #tpu.pipeline_mode<synchronous>, transform_indices = @transform_5, window_bounds = array<i64: 288, 32>}, {pipeline_mode = #tpu.pipeline_mode<synchronous>, transform_indices = @transform_6, window_bounds = array<i64: 1, 32>}, {pipeline_mode = #tpu.pipeline_mode<synchronous>, transform_indices = @transform_7, window_bounds = array<i64: 2, 32, 32>}, {pipeline_mode = #tpu.pipeline_mode<synchronous>, transform_indices = @transform_8, window_bounds = array<i64: 2, 1, 32>}, {pipeline_mode = #tpu.pipeline_mode<synchronous>, transform_indices = @transform_9, window_bounds = array<i64: 32, 128>}, {pipeline_mode = #tpu.pipeline_mode<synchronous>, transform_indices = @transform_10, window_bounds = array<i64: 1, 128>}, {transform_indices = @transform_11, window_bounds = array<i64: 8, 128>}]} {
    %c0 = arith.constant 0 : index
    %c0_0 = arith.constant 0 : index
    %0 = vector.load %arg1[%c0, %c0_0] : memref<8x288xf32, #tpu.memory_space<vmem>>, vector<8x288xf32>
    %1 = arith.truncf %0 : vector<8x288xf32> to vector<8x288xbf16>
    %c0_1 = arith.constant 0 : index
    %c0_2 = arith.constant 0 : index
    %2 = vector.load %arg2[%c0_1, %c0_2] : memref<288x96xbf16, #tpu.memory_space<vmem>>, vector<288x96xbf16>
    %cst = arith.constant dense<0.000000e+00> : vector<8x96xf32>
    %3 = tpu.matmul %1, %2, %cst {dimension_numbers = #tpu.dot_dimension_numbers<[1], [0], [0], [1], [0, 0, 1, 1], [], []>} : vector<8x288xbf16>, vector<288x96xbf16>, vector<8x96xf32> -> vector<8x96xf32>
    %c0_3 = arith.constant 0 : index
    %c0_4 = arith.constant 0 : index
    %4 = vector.load %arg3[%c0_3, %c0_4] : memref<1x96xf32, #tpu.memory_space<vmem>>, vector<1x96xf32>
    %5 = vector.broadcast %4 : vector<1x96xf32> to vector<8x96xf32>
    %6 = arith.addf %3, %5 : vector<8x96xf32>
    %cst_5 = arith.constant 0.000000e+00 : f32
    %7 = vector.broadcast %cst_5 : f32 to vector<8x96xf32>
    %8 = arith.maximumf %6, %7 : vector<8x96xf32>
    %9 = arith.truncf %8 : vector<8x96xf32> to vector<8x96xbf16>
    %c0_6 = arith.constant 0 : index
    %c0_7 = arith.constant 0 : index
    %10 = vector.load %arg4[%c0_6, %c0_7] : memref<96x288xbf16, #tpu.memory_space<vmem>>, vector<96x288xbf16>
    %cst_8 = arith.constant dense<0.000000e+00> : vector<8x288xf32>
    %11 = tpu.matmul %9, %10, %cst_8 {dimension_numbers = #tpu.dot_dimension_numbers<[1], [0], [0], [1], [0, 0, 1, 1], [], []>} : vector<8x96xbf16>, vector<96x288xbf16>, vector<8x288xf32> -> vector<8x288xf32>
    %c0_9 = arith.constant 0 : index
    %c0_10 = arith.constant 0 : index
    %12 = vector.load %arg5[%c0_9, %c0_10] : memref<1x288xf32, #tpu.memory_space<vmem>>, vector<1x288xf32>
    %13 = vector.broadcast %12 : vector<1x288xf32> to vector<8x288xf32>
    %14 = arith.addf %11, %13 : vector<8x288xf32>
    %15 = tpu.iota {dimensions = array<i32: 1>} : vector<8x288xi32>
    %c88_i32 = arith.constant 88 : i32
    %16 = vector.broadcast %c88_i32 : i32 to vector<8x288xi32>
    %17 = arith.cmpi slt, %15, %16 : vector<8x288xi32>
    %c250_i32 = arith.constant 250 : i32
    %18 = vector.broadcast %c250_i32 : i32 to vector<8x288xi32>
    %19 = arith.cmpi sge, %15, %18 : vector<8x288xi32>
    %20 = arith.ori %17, %19 : vector<8x288xi1>
    %cst_11 = arith.constant 0.000000e+00 : f32
    %21 = vector.broadcast %cst_11 : f32 to vector<8x288xf32>
    %22 = arith.select %20, %0, %21 : vector<8x288xi1>, vector<8x288xf32>
    %23 = arith.addf %22, %14 : vector<8x288xf32>
    %cst_12 = arith.constant dense<0.000000e+00> : vector<8xf32>
    %24 = vector.multi_reduction <add>, %23, %cst_12 [1] : vector<8x288xf32> to vector<8xf32>
    %25 = vector.shape_cast %24 : vector<8xf32> to vector<8x1xf32>
    %cst_13 = arith.constant 2.880000e+02 : f32
    %26 = vector.broadcast %cst_13 : f32 to vector<8x1xf32>
    %27 = arith.divf %25, %26 : vector<8x1xf32>
    %28 = vector.broadcast %27 : vector<8x1xf32> to vector<8x288xf32>
    %29 = arith.subf %23, %28 : vector<8x288xf32>
    %30 = arith.mulf %29, %29 : vector<8x288xf32>
    %cst_14 = arith.constant dense<0.000000e+00> : vector<8xf32>
    %31 = vector.multi_reduction <add>, %30, %cst_14 [1] : vector<8x288xf32> to vector<8xf32>
    %32 = vector.shape_cast %31 : vector<8xf32> to vector<8x1xf32>
    %cst_15 = arith.constant 2.880000e+02 : f32
    %33 = vector.broadcast %cst_15 : f32 to vector<8x1xf32>
    %34 = arith.divf %32, %33 : vector<8x1xf32>
    %cst_16 = arith.constant 9.99999974E-6 : f32
    %35 = vector.broadcast %cst_16 : f32 to vector<8x1xf32>
    %36 = arith.addf %34, %35 : vector<8x1xf32>
    %37 = math.rsqrt %36 : vector<8x1xf32>
    %38 = vector.broadcast %37 : vector<8x1xf32> to vector<8x288xf32>
    %39 = arith.mulf %29, %38 : vector<8x288xf32>
    %40 = arith.truncf %39 : vector<8x288xf32> to vector<8x288xbf16>
    %c0_17 = arith.constant 0 : index
    %c0_18 = arith.constant 0 : index
    %41 = vector.load %arg6[%c0_17, %c0_18] : memref<288x32xbf16, #tpu.memory_space<vmem>>, vector<288x32xbf16>
    %cst_19 = arith.constant dense<0.000000e+00> : vector<8x32xf32>
    %42 = tpu.matmul %40, %41, %cst_19 {dimension_numbers = #tpu.dot_dimension_numbers<[1], [0], [0], [1], [0, 0, 1, 1], [], []>} : vector<8x288xbf16>, vector<288x32xbf16>, vector<8x32xf32> -> vector<8x32xf32>
    %c0_20 = arith.constant 0 : index
    %c0_21 = arith.constant 0 : index
    %43 = vector.load %arg7[%c0_20, %c0_21] : memref<1x32xf32, #tpu.memory_space<vmem>>, vector<1x32xf32>
    %44 = vector.broadcast %43 : vector<1x32xf32> to vector<8x32xf32>
    %45 = arith.addf %42, %44 : vector<8x32xf32>
    %cst_22 = arith.constant 0.000000e+00 : f32
    %46 = vector.broadcast %cst_22 : f32 to vector<8x32xf32>
    %47 = arith.maximumf %45, %46 : vector<8x32xf32>
    %cst_23 = arith.constant dense<0.000000e+00> : vector<8xf32>
    %48 = vector.multi_reduction <add>, %47, %cst_23 [1] : vector<8x32xf32> to vector<8xf32>
    %49 = vector.shape_cast %48 : vector<8xf32> to vector<8x1xf32>
    %cst_24 = arith.constant 3.200000e+01 : f32
    %50 = vector.broadcast %cst_24 : f32 to vector<8x1xf32>
    %51 = arith.divf %49, %50 : vector<8x1xf32>
    %52 = vector.broadcast %51 : vector<8x1xf32> to vector<8x32xf32>
    %53 = arith.subf %47, %52 : vector<8x32xf32>
    %54 = arith.mulf %53, %53 : vector<8x32xf32>
    %cst_25 = arith.constant dense<0.000000e+00> : vector<8xf32>
    %55 = vector.multi_reduction <add>, %54, %cst_25 [1] : vector<8x32xf32> to vector<8xf32>
    %56 = vector.shape_cast %55 : vector<8xf32> to vector<8x1xf32>
    %cst_26 = arith.constant 3.200000e+01 : f32
    %57 = vector.broadcast %cst_26 : f32 to vector<8x1xf32>
    %58 = arith.divf %56, %57 : vector<8x1xf32>
    %cst_27 = arith.constant 9.99999974E-6 : f32
    %59 = vector.broadcast %cst_27 : f32 to vector<8x1xf32>
    %60 = arith.addf %58, %59 : vector<8x1xf32>
    %61 = math.rsqrt %60 : vector<8x1xf32>
    %62 = vector.broadcast %61 : vector<8x1xf32> to vector<8x32xf32>
    %63 = arith.mulf %53, %62 : vector<8x32xf32>
    %64 = arith.truncf %63 : vector<8x32xf32> to vector<8x32xbf16>
    %c0_28 = arith.constant 0 : index
    %c0_29 = arith.constant 0 : index
    %c0_30 = arith.constant 0 : index
    %65 = vector.load %arg8[%c0_28, %c0_29, %c0_30] : memref<2x32x32xbf16, #tpu.memory_space<vmem>>, vector<1x32x32xbf16>
    %66 = vector.shape_cast %65 : vector<1x32x32xbf16> to vector<32x32xbf16>
    %cst_31 = arith.constant dense<0.000000e+00> : vector<8x32xf32>
    %67 = tpu.matmul %64, %66, %cst_31 {dimension_numbers = #tpu.dot_dimension_numbers<[1], [0], [0], [1], [0, 0, 1, 1], [], []>} : vector<8x32xbf16>, vector<32x32xbf16>, vector<8x32xf32> -> vector<8x32xf32>
    %c0_32 = arith.constant 0 : index
    %c0_33 = arith.constant 0 : index
    %c0_34 = arith.constant 0 : index
    %68 = vector.load %arg9[%c0_32, %c0_33, %c0_34] : memref<2x1x32xf32, #tpu.memory_space<vmem>>, vector<1x1x32xf32>
    %69 = vector.shape_cast %68 : vector<1x1x32xf32> to vector<1x32xf32>
    %70 = vector.broadcast %69 : vector<1x32xf32> to vector<8x32xf32>
    %71 = arith.addf %67, %70 : vector<8x32xf32>
    %cst_35 = arith.constant 0.000000e+00 : f32
    %72 = vector.broadcast %cst_35 : f32 to vector<8x32xf32>
    %73 = arith.maximumf %71, %72 : vector<8x32xf32>
    %cst_36 = arith.constant dense<0.000000e+00> : vector<8xf32>
    %74 = vector.multi_reduction <add>, %73, %cst_36 [1] : vector<8x32xf32> to vector<8xf32>
    %75 = vector.shape_cast %74 : vector<8xf32> to vector<8x1xf32>
    %cst_37 = arith.constant 3.200000e+01 : f32
    %76 = vector.broadcast %cst_37 : f32 to vector<8x1xf32>
    %77 = arith.divf %75, %76 : vector<8x1xf32>
    %78 = vector.broadcast %77 : vector<8x1xf32> to vector<8x32xf32>
    %79 = arith.subf %73, %78 : vector<8x32xf32>
    %80 = arith.mulf %79, %79 : vector<8x32xf32>
    %cst_38 = arith.constant dense<0.000000e+00> : vector<8xf32>
    %81 = vector.multi_reduction <add>, %80, %cst_38 [1] : vector<8x32xf32> to vector<8xf32>
    %82 = vector.shape_cast %81 : vector<8xf32> to vector<8x1xf32>
    %cst_39 = arith.constant 3.200000e+01 : f32
    %83 = vector.broadcast %cst_39 : f32 to vector<8x1xf32>
    %84 = arith.divf %82, %83 : vector<8x1xf32>
    %cst_40 = arith.constant 9.99999974E-6 : f32
    %85 = vector.broadcast %cst_40 : f32 to vector<8x1xf32>
    %86 = arith.addf %84, %85 : vector<8x1xf32>
    %87 = math.rsqrt %86 : vector<8x1xf32>
    %88 = vector.broadcast %87 : vector<8x1xf32> to vector<8x32xf32>
    %89 = arith.mulf %79, %88 : vector<8x32xf32>
    %90 = arith.truncf %89 : vector<8x32xf32> to vector<8x32xbf16>
    %c1 = arith.constant 1 : index
    %c0_41 = arith.constant 0 : index
    %c0_42 = arith.constant 0 : index
    %91 = vector.load %arg8[%c1, %c0_41, %c0_42] : memref<2x32x32xbf16, #tpu.memory_space<vmem>>, vector<1x32x32xbf16>
    %92 = vector.shape_cast %91 : vector<1x32x32xbf16> to vector<32x32xbf16>
    %cst_43 = arith.constant dense<0.000000e+00> : vector<8x32xf32>
    %93 = tpu.matmul %90, %92, %cst_43 {dimension_numbers = #tpu.dot_dimension_numbers<[1], [0], [0], [1], [0, 0, 1, 1], [], []>} : vector<8x32xbf16>, vector<32x32xbf16>, vector<8x32xf32> -> vector<8x32xf32>
    %c1_44 = arith.constant 1 : index
    %c0_45 = arith.constant 0 : index
    %c0_46 = arith.constant 0 : index
    %94 = vector.load %arg9[%c1_44, %c0_45, %c0_46] : memref<2x1x32xf32, #tpu.memory_space<vmem>>, vector<1x1x32xf32>
    %95 = vector.shape_cast %94 : vector<1x1x32xf32> to vector<1x32xf32>
    %96 = vector.broadcast %95 : vector<1x32xf32> to vector<8x32xf32>
    %97 = arith.addf %93, %96 : vector<8x32xf32>
    %cst_47 = arith.constant 0.000000e+00 : f32
    %98 = vector.broadcast %cst_47 : f32 to vector<8x32xf32>
    %99 = arith.maximumf %97, %98 : vector<8x32xf32>
    %100 = arith.truncf %99 : vector<8x32xf32> to vector<8x32xbf16>
    %c0_48 = arith.constant 0 : index
    %c0_49 = arith.constant 0 : index
    %101 = vector.load %arg10[%c0_48, %c0_49] : memref<32x128xbf16, #tpu.memory_space<vmem>>, vector<32x128xbf16>
    %cst_50 = arith.constant dense<0.000000e+00> : vector<8x128xf32>
    %102 = tpu.matmul %100, %101, %cst_50 {dimension_numbers = #tpu.dot_dimension_numbers<[1], [0], [0], [1], [0, 0, 1, 1], [], []>} : vector<8x32xbf16>, vector<32x128xbf16>, vector<8x128xf32> -> vector<8x128xf32>
    %c0_51 = arith.constant 0 : index
    %c0_52 = arith.constant 0 : index
    %103 = vector.load %arg11[%c0_51, %c0_52] : memref<1x128xf32, #tpu.memory_space<vmem>>, vector<1x128xf32>
    %104 = vector.broadcast %103 : vector<1x128xf32> to vector<8x128xf32>
    %105 = arith.addf %102, %104 : vector<8x128xf32>
    %c0_53 = arith.constant 0 : index
    %c0_54 = arith.constant 0 : index
    %106 = vector.load %arg12[%c0_53, %c0_54] : memref<8x128xf32, #tpu.memory_space<vmem>>, vector<8x128xf32>
    tpu.vector_store %arg12[%c0_53, %c0_54], %105 {strides = array<i32>} : memref<8x128xf32, #tpu.memory_space<vmem>>, vector<8x128xf32>,
    return
  }
  func.func @transform_0(%arg0: i32) -> (i32, i32) {
    %c0_i32 = arith.constant 0 : i32
    %c0_i32_0 = arith.constant 0 : i32
    return %arg0, %c0_i32 : i32, i32
  }
  func.func @transform_1(%arg0: i32) -> (i32, i32) {
    %c0_i32 = arith.constant 0 : i32
    %c0_i32_0 = arith.constant 0 : i32
    %c0_i32_1 = arith.constant 0 : i32
    return %c0_i32, %c0_i32_0 : i32, i32
  }
  func.func @transform_2(%arg0: i32) -> (i32, i32) {
    %c0_i32 = arith.constant 0 : i32
    %c0_i32_0 = arith.constant 0 : i32
    %c0_i32_1 = arith.constant 0 : i32
    return %c0_i32, %c0_i32_0 : i32, i32
  }
  func.func @transform_3(%arg0: i32) -> (i32, i32) {
    %c0_i32 = arith.constant 0 : i32
    %c0_i32_0 = arith.constant 0 : i32
    %c0_i32_1 = arith.constant 0 : i32
    return %c0_i32, %c0_i32_0 : i32, i32
  }
  func.func @transform_4(%arg0: i32) -> (i32, i32) {
    %c0_i32 = arith.constant 0 : i32
    %c0_i32_0 = arith.constant 0 : i32
    %c0_i32_1 = arith.constant 0 : i32
    return %c0_i32, %c0_i32_0 : i32, i32
  }
  func.func @transform_5(%arg0: i32) -> (i32, i32) {
    %c0_i32 = arith.constant 0 : i32
    %c0_i32_0 = arith.constant 0 : i32
    %c0_i32_1 = arith.constant 0 : i32
    return %c0_i32, %c0_i32_0 : i32, i32
  }
  func.func @transform_6(%arg0: i32) -> (i32, i32) {
    %c0_i32 = arith.constant 0 : i32
    %c0_i32_0 = arith.constant 0 : i32
    %c0_i32_1 = arith.constant 0 : i32
    return %c0_i32, %c0_i32_0 : i32, i32
  }
  func.func @transform_7(%arg0: i32) -> (i32, i32, i32) {
    %c0_i32 = arith.constant 0 : i32
    %c0_i32_0 = arith.constant 0 : i32
    %c0_i32_1 = arith.constant 0 : i32
    %c0_i32_2 = arith.constant 0 : i32
    return %c0_i32, %c0_i32_0, %c0_i32_1 : i32, i32, i32
  }
  func.func @transform_8(%arg0: i32) -> (i32, i32, i32) {
    %c0_i32 = arith.constant 0 : i32
    %c0_i32_0 = arith.constant 0 : i32
    %c0_i32_1 = arith.constant 0 : i32
    %c0_i32_2 = arith.constant 0 : i32
    return %c0_i32, %c0_i32_0, %c0_i32_1 : i32, i32, i32
  }
  func.func @transform_9(%arg0: i32) -> (i32, i32) {
    %c0_i32 = arith.constant 0 : i32
    %c0_i32_0 = arith.constant 0 : i32
    %c0_i32_1 = arith.constant 0 : i32
    return %c0_i32, %c0_i32_0 : i32, i32
  }
  func.func @transform_10(%arg0: i32) -> (i32, i32) {
    %c0_i32 = arith.constant 0 : i32
    %c0_i32_0 = arith.constant 0 : i32
    %c0_i32_1 = arith.constant 0 : i32
    return %c0_i32, %c0_i32_0 : i32, i32
  }
  func.func @transform_11(%arg0: i32) -> (i32, i32) {
    %c0_i32 = arith.constant 0 : i32
    %c0_i32_0 = arith.constant 0 : i32
    return %arg0, %c0_i32 : i32, i32
  }
}

</mosaic_0001>

<llo_original>
// kernel: forward.1
$region0: #{forward.1}
  #allocation0 [shape = 'u32[]', space=smem, size = 0x4, offset = 0x4, fixed_abs, tag = 'smem constant byte address 0x4 - core index']
  #allocation1 [shape = 'u32[144,128]{1,0:T(1,128)}', space=vmem, size = 0x12000, scoped, tag = 'internal scratch']
  %s0 = inlined_call_operand.vmem [shape: f32[8,288], index: 0, kind: input, shape index: {}]
  %s1 = inlined_call_operand.vmem [shape: bf16[288,96], index: 1, kind: input, shape index: {}]
  %s2 = inlined_call_operand.vmem [shape: f32[1,96], index: 2, kind: input, shape index: {}]
  %s3 = inlined_call_operand.vmem [shape: bf16[96,288], index: 3, kind: input, shape index: {}]
  %s4 = inlined_call_operand.vmem [shape: f32[1,288], index: 4, kind: input, shape index: {}]
  %s5 = inlined_call_operand.vmem [shape: bf16[288,32], index: 5, kind: input, shape index: {}]
  %s6 = inlined_call_operand.vmem [shape: f32[1,32], index: 6, kind: input, shape index: {}]
  %s7 = inlined_call_operand.vmem [shape: bf16[2,32,32], index: 7, kind: input, shape index: {}]
  %s8 = inlined_call_operand.vmem [shape: f32[2,1,32], index: 8, kind: input, shape index: {}]
  %s9 = inlined_call_operand.vmem [shape: bf16[32,128], index: 9, kind: input, shape index: {}]
  %s10 = inlined_call_operand.vmem [shape: f32[1,128], index: 10, kind: input, shape index: {}]
  %s11 = inlined_call_operand.vmem [shape: f32[8,128], index: 11, kind: output, shape index: {}]
  %s12 = sld [smem:[#allocation0]]
  $region54: #{forward.1} parent=0
    _
  %s14 = ssub.s32 1, %s12
  %s15 = scalar_select 0, %s14, %s12
  // Predicated region
  $region2: #{forward.1} parent=0 // pred_check
    _
  $region3: #{forward.1} parent=0 // pred_check_branch
    %17 = sbr.rel (0) target = $region5
  $region4: #{forward.1} parent=0 // pred_region
    _
  $region5: #{forward.1} parent=0 // pred_fallthru
    _
  // Predicated region
  $region6: #{forward.1} parent=0 // pred_check
    _
  $region7: #{forward.1} parent=0 // pred_check_branch
    %19 = sbr.rel (0) target = $region9
  $region8: #{forward.1} parent=0 // pred_region
    _
  $region9: #{forward.1} parent=0 // pred_fallthru
    _
  // Predicated region
  $region10: #{forward.1} parent=0 // pred_check
    _
  $region11: #{forward.1} parent=0 // pred_check_branch
    %21 = sbr.rel (0) target = $region13
  $region12: #{forward.1} parent=0 // pred_region
    _
  $region13: #{forward.1} parent=0 // pred_fallthru
    _
  // Predicated region
  $region14: #{forward.1} parent=0 // pred_check
    _
  $region15: #{forward.1} parent=0 // pred_check_branch
    %23 = sbr.rel (0) target = $region17
  $region16: #{forward.1} parent=0 // pred_region
    _
  $region17: #{forward.1} parent=0 // pred_fallthru
    _
  // Predicated region
  $region18: #{forward.1} parent=0 // pred_check
    _
  $region19: #{forward.1} parent=0 // pred_check_branch
    %25 = sbr.rel (0) target = $region21
  $region20: #{forward.1} parent=0 // pred_region
    _
  $region21: #{forward.1} parent=0 // pred_fallthru
    _
  // Predicated region
  $region22: #{forward.1} parent=0 // pred_check
    _
  $region23: #{forward.1} parent=0 // pred_check_branch
    %27 = sbr.rel (0) target = $region25
  $region24: #{forward.1} parent=0 // pred_region
    _
  $region25: #{forward.1} parent=0 // pred_fallthru
    _
  // Predicated region
  $region26: #{forward.1} parent=0 // pred_check
    _
  $region27: #{forward.1} parent=0 // pred_check_branch
    %29 = sbr.rel (0) target = $region29
  $region28: #{forward.1} parent=0 // pred_region
    _
  $region29: #{forward.1} parent=0 // pred_fallthru
    _
  // Predicated region
  $region30: #{forward.1} parent=0 // pred_check
    _
  $region31: #{forward.1} parent=0 // pred_check_branch
    %31 = sbr.rel (0) target = $region33
  $region32: #{forward.1} parent=0 // pred_region
    _
  $region33: #{forward.1} parent=0 // pred_fallthru
    _
  // Predicated region
  $region34: #{forward.1} parent=0 // pred_check
    _
  $region35: #{forward.1} parent=0 // pred_check_branch
    %33 = sbr.rel (0) target = $region37
  $region36: #{forward.1} parent=0 // pred_region
    _
  $region37: #{forward.1} parent=0 // pred_fallthru
    _
  // Predicated region
  $region38: #{forward.1} parent=0 // pred_check
    _
  $region39: #{forward.1} parent=0 // pred_check_branch
    %35 = sbr.rel (0) target = $region41
  $region40: #{forward.1} parent=0 // pred_region
    _
  $region41: #{forward.1} parent=0 // pred_fallthru
    _
  // Predicated region
  $region42: #{forward.1} parent=0 // pred_check
    _
  $region43: #{forward.1} parent=0 // pred_check_branch
    %37 = sbr.rel (0) target = $region45
  $region44: #{forward.1} parent=0 // pred_region
    _
  $region45: #{forward.1} parent=0 // pred_fallthru
    _
  %v39 = vld [vmem:[%s0] sm:$0xff]
  %v40 = vld [vmem:[%s0 + $0x8] sm:$0xff]
  %v41 = vld [vmem:[%s0 + $0x10] sm:$0xff]
  %v42 = vpack.c.bf16 %v39, %v39
  %v43 = vpack.c.bf16 %v40, %v40
  %v44 = vpack.c.bf16 %v41, %v41
  %v45 = vld [vmem:[%s1] sm:$0xf]
  %v46 = vld [vmem:[%s1 + $0x4] sm:$0xf]
  %v47 = vld [vmem:[%s1 + $0x8] sm:$0xf]
  %v48 = vld [vmem:[%s1 + $0xc] sm:$0xf]
  %v49 = vld [vmem:[%s1 + $0x10] sm:$0xf]
  %v50 = vld [vmem:[%s1 + $0x14] sm:$0xf]
  %v51 = vld [vmem:[%s1 + $0x18] sm:$0xf]
  %v52 = vld [vmem:[%s1 + $0x1c] sm:$0xf]
  %v53 = vld [vmem:[%s1 + $0x20] sm:$0xf]
  %v54 = vld [vmem:[%s1 + $0x24] sm:$0xf]
  %v55 = vld [vmem:[%s1 + $0x28] sm:$0xf]
  %v56 = vld [vmem:[%s1 + $0x2c] sm:$0xf]
  %v57 = vld [vmem:[%s1 + $0x30] sm:$0xf]
  %v58 = vld [vmem:[%s1 + $0x34] sm:$0xf]
  %v59 = vld [vmem:[%s1 + $0x38] sm:$0xf]
  %v60 = vld [vmem:[%s1 + $0x3c] sm:$0xf]
  %v61 = vld [vmem:[%s1 + $0x40] sm:$0xf]
  %v62 = vld [vmem:[%s1 + $0x44] sm:$0xf]
  %v63 = vld [vmem:[%s1 + $0x48] sm:$0xf]
  %v64 = vld [vmem:[%s1 + $0x4c] sm:$0xf]
  %v65 = vld [vmem:[%s1 + $0x50] sm:$0xf]
  %v66 = vld [vmem:[%s1 + $0x54] sm:$0xf]
  %v67 = vld [vmem:[%s1 + $0x58] sm:$0xf]
  %v68 = vld [vmem:[%s1 + $0x5c] sm:$0xf]
  %v69 = vld [vmem:[%s1 + $0x60] sm:$0xf]
  %v70 = vld [vmem:[%s1 + $0x64] sm:$0xf]
  %v71 = vld [vmem:[%s1 + $0x68] sm:$0xf]
  %v72 = vld [vmem:[%s1 + $0x6c] sm:$0xf]
  %v73 = vld [vmem:[%s1 + $0x70] sm:$0xf]
  %v74 = vld [vmem:[%s1 + $0x74] sm:$0xf]
  %v75 = vld [vmem:[%s1 + $0x78] sm:$0xf]
  %v76 = vld [vmem:[%s1 + $0x7c] sm:$0xf]
  %v77 = vld [vmem:[%s1 + $0x80] sm:$0xf]
  %v78 = vld [vmem:[%s1 + $0x84] sm:$0xf]
  %v79 = vld [vmem:[%s1 + $0x88] sm:$0xf]
  %v80 = vld [vmem:[%s1 + $0x8c] sm:$0xf]
  %v81 = vld [vmem:[%s2] sm:$0x1]
  %v83 = vlaneseq
  %v84 = vshrl.u32 %v83, 7
  %v85 = vsub.s32 0, %v84
  %v86 = vrot.slane %v81, %v85
  %v124 = vunpack.c.l.b16 %v45
  %v125 = vunpack.c.l.b16 %v46
  %v126 = vunpack.c.l.b16 %v47
  %v127 = vunpack.c.l.b16 %v48
  %v128 = vunpack.c.l.b16 %v49
  %v129 = vunpack.c.l.b16 %v50
  %v130 = vunpack.c.l.b16 %v51
  %v131 = vunpack.c.l.b16 %v52
  %v132 = vunpack.c.l.b16 %v53
  %v133 = vunpack.c.l.b16 %v54
  %v134 = vunpack.c.l.b16 %v55
  %v135 = vunpack.c.l.b16 %v56
  %v136 = vunpack.c.l.b16 %v57
  %v137 = vunpack.c.l.b16 %v58
  %v138 = vunpack.c.l.b16 %v59
  %v139 = vunpack.c.l.b16 %v60
  %v140 = vunpack.c.l.b16 %v61
  %v141 = vunpack.c.l.b16 %v62
  %v142 = vunpack.c.l.b16 %v63
  %v143 = vunpack.c.l.b16 %v64
  %v144 = vunpack.c.l.b16 %v65
  %v145 = vunpack.c.l.b16 %v66
  %v146 = vunpack.c.l.b16 %v67
  %v147 = vunpack.c.l.b16 %v68
  %v148 = vunpack.c.l.b16 %v69
  %v149 = vunpack.c.l.b16 %v70
  %v150 = vunpack.c.l.b16 %v71
  %v151 = vunpack.c.l.b16 %v72
  %v152 = vunpack.c.l.b16 %v73
  %v153 = vunpack.c.l.b16 %v74
  %v154 = vunpack.c.l.b16 %v75
  %v155 = vunpack.c.l.b16 %v76
  %v156 = vunpack.c.l.b16 %v77
  %v157 = vunpack.c.l.b16 %v78
  %v158 = vunpack.c.l.b16 %v79
  %v159 = vunpack.c.l.b16 %v80
  %v160 = vpack.c.b16 %v125, %v124
  %v161 = vpack.c.b16 %v127, %v126
  %v162 = vpack.c.b16 %v129, %v128
  %v163 = vpack.c.b16 %v131, %v130
  %v164 = vpack.c.b16 %v133, %v132
  %v165 = vpack.c.b16 %v135, %v134
  %v166 = vpack.c.b16 %v137, %v136
  %v167 = vpack.c.b16 %v139, %v138
  %v168 = vpack.c.b16 %v141, %v140
  %v169 = vpack.c.b16 %v143, %v142
  %v170 = vpack.c.b16 %v145, %v144
  %v171 = vpack.c.b16 %v147, %v146
  %v172 = vpack.c.b16 %v149, %v148
  %v173 = vpack.c.b16 %v151, %v150
  %v174 = vpack.c.b16 %v153, %v152
  %v175 = vpack.c.b16 %v155, %v154
  %v176 = vpack.c.b16 %v157, %v156
  %v177 = vpack.c.b16 %v159, %v158
  %vm196 = vcmask 261120
  %v198 = vsel %vm196, %v44, 0
  %200 = vmatprep.subr.bf16.mxu0 0
  %201 = vmatpush1.bf16.msra.mxu0 %v160
  %202 = vmatprep.subr.bf16.mxu0 0
  %203 = vmatpush1.bf16.msra.mxu0 %v161
  %204 = vmatprep.subr.bf16.mxu0 0
  %205 = vmatpush1.bf16.msra.mxu0 %v162
  %206 = vmatprep.subr.bf16.mxu0 0
  %207 = vmatpush1.bf16.msra.mxu0 %v163
  %208 = vmatprep.subr.bf16.mxu0 0
  %209 = vmatpush1.bf16.msra.mxu0 %v164
  %210 = vmatprep.subr.bf16.mxu0 0
  %211 = vmatpush1.bf16.msra.mxu0 %v165
  %212 = vmatprep.subr.bf16.mxu0 0
  %213 = vmatpush1.bf16.msra.mxu0 %v166
  %214 = vmatprep.subr.bf16.mxu0 0
  %215 = vmatpush1.bf16.msra.mxu0 %v167
  %216 = vmatprep.subr.bf16.mxu0 0
  %217 = vmatpush1.bf16.msra.mxu0 %v168
  %218 = vmatprep.subr.bf16.mxu0 0
  %219 = vmatpush1.bf16.msra.mxu0 %v169
  %220 = vmatprep.subr.bf16.mxu0 0
  %221 = vmatpush1.bf16.msra.mxu0 %v170
  %222 = vmatprep.subr.bf16.mxu0 0
  %223 = vmatpush1.bf16.msra.mxu0 %v171
  %224 = vmatprep.subr.bf16.mxu0 0
  %225 = vmatpush1.bf16.msra.mxu0 %v172
  %226 = vmatprep.subr.bf16.mxu0 0
  %227 = vmatpush1.bf16.msra.mxu0 %v173
  %228 = vmatprep.subr.bf16.mxu0 0
  %229 = vmatpush1.bf16.msra.mxu0 %v174
  %230 = vmatprep.subr.bf16.mxu0 0
  %231 = vmatpush1.bf16.msra.mxu0 %v175
  %232 = vmatprep.mubr.bf16.mxu0 %v43
  %233 = vmatmul.mubr.bf16.gmra.mrb[0].mxu0 %v42
  %v234 = vpop.f32.mrb[0].mxu0
  %v235 = vadd.f32 %v86, %v234
  %v236 = vpop.f32.mrb[0].mxu0
  %v237 = vpop.f32.mrb[0].mxu0
  %v238 = vpop.f32.mrb[0].mxu0
  %239 = vdwg.mxu0
  %240 = vmatprep.subr.bf16.mxu0 0
  %241 = vmatpush1.bf16.msra.mxu0 %v176
  %242 = vmatprep.subr.bf16.mxu0 0
  %243 = vmatpush1.bf16.msra.mxu0 %v177
  %244 = vmatprep.subr.bf16.mxu0 0
  %245 = vmatpush1.bf16.msra.mxu0 0
  %246 = vmatprep.subr.bf16.mxu0 0
  %247 = vmatpush1.bf16.msra.mxu0 0
  %248 = vmatprep.subr.bf16.mxu0 0
  %249 = vmatpush1.bf16.msra.mxu0 0
  %250 = vmatprep.subr.bf16.mxu0 0
  %251 = vmatpush1.bf16.msra.mxu0 0
  %252 = vmatprep.subr.bf16.mxu0 0
  %253 = vmatpush1.bf16.msra.mxu0 0
  %254 = vmatprep.subr.bf16.mxu0 0
  %255 = vmatpush1.bf16.msra.mxu0 0
  %256 = vmatprep.subr.bf16.mxu0 0
  %257 = vmatpush1.bf16.msra.mxu0 0
  %258 = vmatprep.subr.bf16.mxu0 0
  %259 = vmatpush1.bf16.msra.mxu0 0
  %260 = vmatprep.subr.bf16.mxu0 0
  %261 = vmatpush1.bf16.msra.mxu0 0
  %262 = vmatprep.subr.bf16.mxu0 0
  %263 = vmatpush1.bf16.msra.mxu0 0
  %264 = vmatprep.subr.bf16.mxu0 0
  %265 = vmatpush1.bf16.msra.mxu0 0
  %266 = vmatprep.subr.bf16.mxu0 0
  %267 = vmatpush1.bf16.msra.mxu0 0
  %268 = vmatprep.subr.bf16.mxu0 0
  %269 = vmatpush1.bf16.msra.mxu0 0
  %270 = vmatprep.subr.bf16.mxu0 0
  %271 = vmatpush1.bf16.msra.mxu0 0
  %272 = vmatprep.mubr.bf16.mxu0 0
  %273 = vmatmul.mubr.bf16.gmra.mrb[0].mxu0 %v198
  %v274 = vpop.f32.mrb[0].mxu0
  %v275 = vadd.f32 %v235, %v274
  %v276 = vpop.f32.mrb[0].mxu0
  %v277 = vpop.f32.mrb[0].mxu0
  %v278 = vpop.f32.mrb[0].mxu0
  %279 = vdwg.mxu0
  %v280 = vmax.f32 %v275, 0.0
  %v281 = vpack.c.bf16 %v280, %v280
  %v282 = vld [vmem:[%s3] sm:$0xff]
  %v283 = vld [vmem:[%s3 + $0x8] sm:$0xf]
  %v284 = vld [vmem:[%s3 + $0xc] sm:$0xff]
  %v285 = vld [vmem:[%s3 + $0x14] sm:$0xf]
  %v286 = vld [vmem:[%s3 + $0x18] sm:$0xff]
  %v287 = vld [vmem:[%s3 + $0x20] sm:$0xf]
  %v288 = vld [vmem:[%s3 + $0x24] sm:$0xff]
  %v289 = vld [vmem:[%s3 + $0x2c] sm:$0xf]
  %v290 = vld [vmem:[%s3 + $0x30] sm:$0xff]
  %v291 = vld [vmem:[%s3 + $0x38] sm:$0xf]
  %v292 = vld [vmem:[%s3 + $0x3c] sm:$0xff]
  %v293 = vld [vmem:[%s3 + $0x44] sm:$0xf]
  %v294 = vld [vmem:[%s3 + $0x48] sm:$0xff]
  %v295 = vld [vmem:[%s3 + $0x50] sm:$0xf]
  %v296 = vld [vmem:[%s3 + $0x54] sm:$0xff]
  %v297 = vld [vmem:[%s3 + $0x5c] sm:$0xf]
  %v298 = vld [vmem:[%s3 + $0x60] sm:$0xff]
  %v299 = vld [vmem:[%s3 + $0x68] sm:$0xf]
  %v300 = vld [vmem:[%s3 + $0x6c] sm:$0xff]
  %v301 = vld [vmem:[%s3 + $0x74] sm:$0xf]
  %v302 = vld [vmem:[%s3 + $0x78] sm:$0xff]
  %v303 = vld [vmem:[%s3 + $0x80] sm:$0xf]
  %v304 = vld [vmem:[%s3 + $0x84] sm:$0xff]
  %v305 = vld [vmem:[%s3 + $0x8c] sm:$0xf]
  %v306 = vld [vmem:[%s4] sm:$0x7]
  %v308 = vlaneseq
  %v309 = vshrl.u32 %v308, 7
  %v310 = vsub.s32 0, %v309
  %v311 = vrot.slane %v306, %v310
  %v312 = vlaneseq
  %v313 = vshrl.u32 %v312, 7
  %v314 = vsub.s32 1, %v313
  %v315 = vrot.slane %v306, %v314
  %v316 = vlaneseq
  %v317 = vshrl.u32 %v316, 7
  %v318 = vsub.s32 2, %v317
  %v319 = vrot.slane %v306, %v318
  %v347 = vunpack.c.l.b16 %v282
  %v348 = vunpack.c.h.b16 %v282
  %v349 = vunpack.c.l.b16 %v283
  %v350 = vunpack.c.l.b16 %v284
  %v351 = vunpack.c.h.b16 %v284
  %v352 = vunpack.c.l.b16 %v285
  %v353 = vunpack.c.l.b16 %v286
  %v354 = vunpack.c.h.b16 %v286
  %v355 = vunpack.c.l.b16 %v287
  %v356 = vunpack.c.l.b16 %v288
  %v357 = vunpack.c.h.b16 %v288
  %v358 = vunpack.c.l.b16 %v289
  %v359 = vunpack.c.l.b16 %v290
  %v360 = vunpack.c.h.b16 %v290
  %v361 = vunpack.c.l.b16 %v291
  %v362 = vunpack.c.l.b16 %v292
  %v363 = vunpack.c.h.b16 %v292
  %v364 = vunpack.c.l.b16 %v293
  %v365 = vunpack.c.l.b16 %v294
  %v366 = vunpack.c.h.b16 %v294
  %v367 = vunpack.c.l.b16 %v295
  %v368 = vunpack.c.l.b16 %v296
  %v369 = vunpack.c.h.b16 %v296
  %v370 = vunpack.c.l.b16 %v297
  %v371 = vunpack.c.l.b16 %v298
  %v372 = vunpack.c.h.b16 %v298
  %v373 = vunpack.c.l.b16 %v299
  %v374 = vunpack.c.l.b16 %v300
  %v375 = vunpack.c.h.b16 %v300
  %v376 = vunpack.c.l.b16 %v301
  %v377 = vunpack.c.l.b16 %v302
  %v378 = vunpack.c.h.b16 %v302
  %v379 = vunpack.c.l.b16 %v303
  %v380 = vunpack.c.l.b16 %v304
  %v381 = vunpack.c.h.b16 %v304
  %v382 = vunpack.c.l.b16 %v305
  %v383 = vpack.c.b16 %v350, %v347
  %v384 = vpack.c.b16 %v351, %v348
  %v385 = vpack.c.b16 %v352, %v349
  %v386 = vpack.c.b16 %v356, %v353
  %v387 = vpack.c.b16 %v357, %v354
  %v388 = vpack.c.b16 %v358, %v355
  %v389 = vpack.c.b16 %v362, %v359
  %v390 = vpack.c.b16 %v363, %v360
  %v391 = vpack.c.b16 %v364, %v361
  %v392 = vpack.c.b16 %v368, %v365
  %v393 = vpack.c.b16 %v369, %v366
  %v394 = vpack.c.b16 %v370, %v367
  %v395 = vpack.c.b16 %v374, %v371
  %v396 = vpack.c.b16 %v375, %v372
  %v397 = vpack.c.b16 %v376, %v373
  %v398 = vpack.c.b16 %v380, %v377
  %v399 = vpack.c.b16 %v381, %v378
  %v400 = vpack.c.b16 %v382, %v379
  %vm419 = vcmask 785408
  %v421 = vsel %vm419, %v281, 0
  %423 = vmatprep.subr.bf16.mxu0 %v384
  %424 = vmatpush1.bf16.msra.mxu0 %v383
  %425 = vmatprep.subr.bf16.mxu0 %v387
  %426 = vmatpush1.bf16.msra.mxu0 %v386
  %427 = vmatprep.subr.bf16.mxu0 %v390
  %428 = vmatpush1.bf16.msra.mxu0 %v389
  %429 = vmatprep.subr.bf16.mxu0 %v393
  %430 = vmatpush1.bf16.msra.mxu0 %v392
  %431 = vmatprep.subr.bf16.mxu0 %v396
  %432 = vmatpush1.bf16.msra.mxu0 %v395
  %433 = vmatprep.subr.bf16.mxu0 %v399
  %434 = vmatpush1.bf16.msra.mxu0 %v398
  %435 = vmatprep.subr.bf16.mxu0 0
  %436 = vmatpush1.bf16.msra.mxu0 0
  %437 = vmatprep.subr.bf16.mxu0 0
  %438 = vmatpush1.bf16.msra.mxu0 0
  %439 = vmatprep.subr.bf16.mxu0 0
  %440 = vmatpush1.bf16.msra.mxu0 0
  %441 = vmatprep.subr.bf16.mxu0 0
  %442 = vmatpush1.bf16.msra.mxu0 0
  %443 = vmatprep.subr.bf16.mxu0 0
  %444 = vmatpush1.bf16.msra.mxu0 0
  %445 = vmatprep.subr.bf16.mxu0 0
  %446 = vmatpush1.bf16.msra.mxu0 0
  %447 = vmatprep.subr.bf16.mxu0 0
  %448 = vmatpush1.bf16.msra.mxu0 0
  %449 = vmatprep.subr.bf16.mxu0 0
  %450 = vmatpush1.bf16.msra.mxu0 0
  %451 = vmatprep.subr.bf16.mxu0 0
  %452 = vmatpush1.bf16.msra.mxu0 0
  %453 = vmatprep.subr.bf16.mxu0 0
  %454 = vmatpush1.bf16.msra.mxu0 0
  %455 = vmatprep.mubr.bf16.mxu0 0
  %456 = vmatmul.mubr.bf16.gmra.mrb[0].mxu0 %v421
  %v457 = vpop.f32.mrb[0].mxu0
  %v458 = vadd.f32 %v311, %v457
  %v459 = vpop.f32.mrb[0].mxu0
  %v460 = vadd.f32 %v315, %v459
  %v461 = vpop.f32.mrb[0].mxu0
  %v462 = vpop.f32.mrb[0].mxu0
  %463 = vdwg.mxu0
  %464 = vmatprep.subr.bf16.mxu0 0
  %465 = vmatpush1.bf16.msra.mxu0 %v385
  %466 = vmatprep.subr.bf16.mxu0 0
  %467 = vmatpush1.bf16.msra.mxu0 %v388
  %468 = vmatprep.subr.bf16.mxu0 0
  %469 = vmatpush1.bf16.msra.mxu0 %v391
  %470 = vmatprep.subr.bf16.mxu0 0
  %471 = vmatpush1.bf16.msra.mxu0 %v394
  %472 = vmatprep.subr.bf16.mxu0 0
  %473 = vmatpush1.bf16.msra.mxu0 %v397
  %474 = vmatprep.subr.bf16.mxu0 0
  %475 = vmatpush1.bf16.msra.mxu0 %v400
  %476 = vmatprep.subr.bf16.mxu0 0
  %477 = vmatpush1.bf16.msra.mxu0 0
  %478 = vmatprep.subr.bf16.mxu0 0
  %479 = vmatpush1.bf16.msra.mxu0 0
  %480 = vmatprep.subr.bf16.mxu0 0
  %481 = vmatpush1.bf16.msra.mxu0 0
  %482 = vmatprep.subr.bf16.mxu0 0
  %483 = vmatpush1.bf16.msra.mxu0 0
  %484 = vmatprep.subr.bf16.mxu0 0
  %485 = vmatpush1.bf16.msra.mxu0 0
  %486 = vmatprep.subr.bf16.mxu0 0
  %487 = vmatpush1.bf16.msra.mxu0 0
  %488 = vmatprep.subr.bf16.mxu0 0
  %489 = vmatpush1.bf16.msra.mxu0 0
  %490 = vmatprep.subr.bf16.mxu0 0
  %491 = vmatpush1.bf16.msra.mxu0 0
  %492 = vmatprep.subr.bf16.mxu0 0
  %493 = vmatpush1.bf16.msra.mxu0 0
  %494 = vmatprep.subr.bf16.mxu0 0
  %495 = vmatpush1.bf16.msra.mxu0 0
  %496 = vmatprep.mubr.bf16.mxu0 0
  %497 = vmatmul.mubr.bf16.gmra.mrb[0].mxu0 %v421
  %v498 = vpop.f32.mrb[0].mxu0
  %v499 = vadd.f32 %v319, %v498
  %v500 = vpop.f32.mrb[0].mxu0
  %v501 = vpop.f32.mrb[0].mxu0
  %v502 = vpop.f32.mrb[0].mxu0
  %503 = vdwg.mxu0
  %v504 = vlaneseq
  %v505 = vand.u32 %v504, 127
  %v506 = vadd.s32 %v505, 128
  %v507 = vadd.s32 %v505, 256
  %vm508 = vcmp.lt.s32.totalorder %v505, 88
  %vm509 = vcmp.lt.s32.totalorder %v506, 88
  %vm510 = vcmp.lt.s32.totalorder %v507, 88
  %vm511 = vcmp.ge.s32.totalorder %v505, 250
  %vm512 = vcmp.ge.s32.totalorder %v506, 250
  %vm513 = vcmp.ge.s32.totalorder %v507, 250
  %vm514 = vmor %vm508, %vm511
  %vm515 = vmor %vm509, %vm512
  %vm516 = vmor %vm510, %vm513
  %v517 = vsel %vm514, %v39, 0.0
  %v518 = vsel %vm515, %v40, 0.0
  %v519 = vsel %vm516, %v41, 0.0
  %v520 = vadd.f32 %v517, %v458
  %v521 = vadd.f32 %v518, %v460
  %v522 = vadd.f32 %v519, %v499
  %v523 = vadd.f32 %v520, %v521
  %v524 = vsel %vm196, %v522, 0.0
  %v525 = vadd.f32 %v523, %v524
  %526 = vadd.xlane.f32.xlu0 %v525
  %v527 = vpop.xlane.xlu0 %526
  %v528 = vrcp.pop 288.0
  %v529 = vmul.f32 %v527, %v528
  %v530 = vsub.f32 %v520, %v529
  %v531 = vsub.f32 %v521, %v529
  %v532 = vsub.f32 %v522, %v529
  %v533 = vmul.f32 %v530, %v530
  %v534 = vmul.f32 %v531, %v531
  %v535 = vmul.f32 %v532, %v532
  %v536 = vadd.f32 %v533, %v534
  %v537 = vsel %vm196, %v535, 0.0
  %v538 = vadd.f32 %v536, %v537
  %539 = vadd.xlane.f32.xlu0 %v538
  %v540 = vpop.xlane.xlu0 %539
  %v541 = vmul.f32 %v540, %v528
  %v542 = vadd.f32 %v541, 1e-05
  %v543 = vrsqrt.pop %v542
  %v544 = vmul.f32 %v530, %v543
  %v545 = vmul.f32 %v531, %v543
  %v546 = vmul.f32 %v532, %v543
  %v547 = vpack.c.bf16 %v544, %v544
  %v548 = vpack.c.bf16 %v545, %v545
  %v549 = vpack.c.bf16 %v546, %v546
  %v550 = vld [vmem:[%s5] sm:$0xf]
  %v551 = vld [vmem:[%s5 + $0x4] sm:$0xf]
  %v552 = vld [vmem:[%s5 + $0x8] sm:$0xf]
  %v553 = vld [vmem:[%s5 + $0xc] sm:$0xf]
  %v554 = vld [vmem:[%s5 + $0x10] sm:$0xf]
  %v555 = vld [vmem:[%s5 + $0x14] sm:$0xf]
  %v556 = vld [vmem:[%s5 + $0x18] sm:$0xf]
  %v557 = vld [vmem:[%s5 + $0x1c] sm:$0xf]
  %v558 = vld [vmem:[%s5 + $0x20] sm:$0xf]
  %v559 = vld [vmem:[%s5 + $0x24] sm:$0xf]
  %v560 = vld [vmem:[%s5 + $0x28] sm:$0xf]
  %v561 = vld [vmem:[%s5 + $0x2c] sm:$0xf]
  %v562 = vld [vmem:[%s5 + $0x30] sm:$0xf]
  %v563 = vld [vmem:[%s5 + $0x34] sm:$0xf]
  %v564 = vld [vmem:[%s5 + $0x38] sm:$0xf]
  %v565 = vld [vmem:[%s5 + $0x3c] sm:$0xf]
  %v566 = vld [vmem:[%s5 + $0x40] sm:$0xf]
  %v567 = vld [vmem:[%s5 + $0x44] sm:$0xf]
  %v568 = vld [vmem:[%s5 + $0x48] sm:$0xf]
  %v569 = vld [vmem:[%s5 + $0x4c] sm:$0xf]
  %v570 = vld [vmem:[%s5 + $0x50] sm:$0xf]
  %v571 = vld [vmem:[%s5 + $0x54] sm:$0xf]
  %v572 = vld [vmem:[%s5 + $0x58] sm:$0xf]
  %v573 = vld [vmem:[%s5 + $0x5c] sm:$0xf]
  %v574 = vld [vmem:[%s5 + $0x60] sm:$0xf]
  %v575 = vld [vmem:[%s5 + $0x64] sm:$0xf]
  %v576 = vld [vmem:[%s5 + $0x68] sm:$0xf]
  %v577 = vld [vmem:[%s5 + $0x6c] sm:$0xf]
  %v578 = vld [vmem:[%s5 + $0x70] sm:$0xf]
  %v579 = vld [vmem:[%s5 + $0x74] sm:$0xf]
  %v580 = vld [vmem:[%s5 + $0x78] sm:$0xf]
  %v581 = vld [vmem:[%s5 + $0x7c] sm:$0xf]
  %v582 = vld [vmem:[%s5 + $0x80] sm:$0xf]
  %v583 = vld [vmem:[%s5 + $0x84] sm:$0xf]
  %v584 = vld [vmem:[%s5 + $0x88] sm:$0xf]
  %v585 = vld [vmem:[%s5 + $0x8c] sm:$0xf]
  %v586 = vld [vmem:[%s6] sm:$0x1]
  %v588 = vlaneseq
  %v589 = vshrl.u32 %v588, 7
  %v590 = vsub.s32 0, %v589
  %v591 = vrot.slane %v586, %v590
  %v629 = vunpack.c.l.b16 %v550
  %v630 = vunpack.c.l.b16 %v551
  %v631 = vunpack.c.l.b16 %v552
  %v632 = vunpack.c.l.b16 %v553
  %v633 = vunpack.c.l.b16 %v554
  %v634 = vunpack.c.l.b16 %v555
  %v635 = vunpack.c.l.b16 %v556
  %v636 = vunpack.c.l.b16 %v557
  %v637 = vunpack.c.l.b16 %v558
  %v638 = vunpack.c.l.b16 %v559
  %v639 = vunpack.c.l.b16 %v560
  %v640 = vunpack.c.l.b16 %v561
  %v641 = vunpack.c.l.b16 %v562
  %v642 = vunpack.c.l.b16 %v563
  %v643 = vunpack.c.l.b16 %v564
  %v644 = vunpack.c.l.b16 %v565
  %v645 = vunpack.c.l.b16 %v566
  %v646 = vunpack.c.l.b16 %v567
  %v647 = vunpack.c.l.b16 %v568
  %v648 = vunpack.c.l.b16 %v569
  %v649 = vunpack.c.l.b16 %v570
  %v650 = vunpack.c.l.b16 %v571
  %v651 = vunpack.c.l.b16 %v572
  %v652 = vunpack.c.l.b16 %v573
  %v653 = vunpack.c.l.b16 %v574
  %v654 = vunpack.c.l.b16 %v575
  %v655 = vunpack.c.l.b16 %v576
  %v656 = vunpack.c.l.b16 %v577
  %v657 = vunpack.c.l.b16 %v578
  %v658 = vunpack.c.l.b16 %v579
  %v659 = vunpack.c.l.b16 %v580
  %v660 = vunpack.c.l.b16 %v581
  %v661 = vunpack.c.l.b16 %v582
  %v662 = vunpack.c.l.b16 %v583
  %v663 = vunpack.c.l.b16 %v584
  %v664 = vunpack.c.l.b16 %v585
  %v665 = vpack.c.b16 %v630, %v629
  %v666 = vpack.c.b16 %v632, %v631
  %v667 = vpack.c.b16 %v634, %v633
  %v668 = vpack.c.b16 %v636, %v635
  %v669 = vpack.c.b16 %v638, %v637
  %v670 = vpack.c.b16 %v640, %v639
  %v671 = vpack.c.b16 %v642, %v641
  %v672 = vpack.c.b16 %v644, %v643
  %v673 = vpack.c.b16 %v646, %v645
  %v674 = vpack.c.b16 %v648, %v647
  %v675 = vpack.c.b16 %v650, %v649
  %v676 = vpack.c.b16 %v652, %v651
  %v677 = vpack.c.b16 %v654, %v653
  %v678 = vpack.c.b16 %v656, %v655
  %v679 = vpack.c.b16 %v658, %v657
  %v680 = vpack.c.b16 %v660, %v659
  %v681 = vpack.c.b16 %v662, %v661
  %v682 = vpack.c.b16 %v664, %v663
  %v702 = vsel %vm196, %v549, 0
  %704 = vmatprep.subr.bf16.mxu0 0
  %705 = vmatpush1.bf16.msra.mxu0 %v665
  %706 = vmatprep.subr.bf16.mxu0 0
  %707 = vmatpush1.bf16.msra.mxu0 %v666
  %708 = vmatprep.subr.bf16.mxu0 0
  %709 = vmatpush1.bf16.msra.mxu0 %v667
  %710 = vmatprep.subr.bf16.mxu0 0
  %711 = vmatpush1.bf16.msra.mxu0 %v668
  %712 = vmatprep.subr.bf16.mxu0 0
  %713 = vmatpush1.bf16.msra.mxu0 %v669
  %714 = vmatprep.subr.bf16.mxu0 0
  %715 = vmatpush1.bf16.msra.mxu0 %v670
  %716 = vmatprep.subr.bf16.mxu0 0
  %717 = vmatpush1.bf16.msra.mxu0 %v671
  %718 = vmatprep.subr.bf16.mxu0 0
  %719 = vmatpush1.bf16.msra.mxu0 %v672
  %720 = vmatprep.subr.bf16.mxu0 0
  %721 = vmatpush1.bf16.msra.mxu0 %v673
  %722 = vmatprep.subr.bf16.mxu0 0
  %723 = vmatpush1.bf16.msra.mxu0 %v674
  %724 = vmatprep.subr.bf16.mxu0 0
  %725 = vmatpush1.bf16.msra.mxu0 %v675
  %726 = vmatprep.subr.bf16.mxu0 0
  %727 = vmatpush1.bf16.msra.mxu0 %v676
  %728 = vmatprep.subr.bf16.mxu0 0
  %729 = vmatpush1.bf16.msra.mxu0 %v677
  %730 = vmatprep.subr.bf16.mxu0 0
  %731 = vmatpush1.bf16.msra.mxu0 %v678
  %732 = vmatprep.subr.bf16.mxu0 0
  %733 = vmatpush1.bf16.msra.mxu0 %v679
  %734 = vmatprep.subr.bf16.mxu0 0
  %735 = vmatpush1.bf16.msra.mxu0 %v680
  %736 = vmatprep.mubr.bf16.mxu0 %v548
  %737 = vmatmul.mubr.bf16.gmra.mrb[0].mxu0 %v547
  %v738 = vpop.f32.mrb[0].mxu0
  %v739 = vadd.f32 %v591, %v738
  %v740 = vpop.f32.mrb[0].mxu0
  %v741 = vpop.f32.mrb[0].mxu0
  %v742 = vpop.f32.mrb[0].mxu0
  %743 = vdwg.mxu0
  %744 = vmatprep.subr.bf16.mxu0 0
  %745 = vmatpush1.bf16.msra.mxu0 %v681
  %746 = vmatprep.subr.bf16.mxu0 0
  %747 = vmatpush1.bf16.msra.mxu0 %v682
  %748 = vmatprep.subr.bf16.mxu0 0
  %749 = vmatpush1.bf16.msra.mxu0 0
  %750 = vmatprep.subr.bf16.mxu0 0
  %751 = vmatpush1.bf16.msra.mxu0 0
  %752 = vmatprep.subr.bf16.mxu0 0
  %753 = vmatpush1.bf16.msra.mxu0 0
  %754 = vmatprep.subr.bf16.mxu0 0
  %755 = vmatpush1.bf16.msra.mxu0 0
  %756 = vmatprep.subr.bf16.mxu0 0
  %757 = vmatpush1.bf16.msra.mxu0 0
  %758 = vmatprep.subr.bf16.mxu0 0
  %759 = vmatpush1.bf16.msra.mxu0 0
  %760 = vmatprep.subr.bf16.mxu0 0
  %761 = vmatpush1.bf16.msra.mxu0 0
  %762 = vmatprep.subr.bf16.mxu0 0
  %763 = vmatpush1.bf16.msra.mxu0 0
  %764 = vmatprep.subr.bf16.mxu0 0
  %765 = vmatpush1.bf16.msra.mxu0 0
  %766 = vmatprep.subr.bf16.mxu0 0
  %767 = vmatpush1.bf16.msra.mxu0 0
  %768 = vmatprep.subr.bf16.mxu0 0
  %769 = vmatpush1.bf16.msra.mxu0 0
  %770 = vmatprep.subr.bf16.mxu0 0
  %771 = vmatpush1.bf16.msra.mxu0 0
  %772 = vmatprep.subr.bf16.mxu0 0
  %773 = vmatpush1.bf16.msra.mxu0 0
  %774 = vmatprep.subr.bf16.mxu0 0
  %775 = vmatpush1.bf16.msra.mxu0 0
  %776 = vmatprep.mubr.bf16.mxu0 0
  %777 = vmatmul.mubr.bf16.gmra.mrb[0].mxu0 %v702
  %v778 = vpop.f32.mrb[0].mxu0
  %v779 = vadd.f32 %v739, %v778
  %v780 = vpop.f32.mrb[0].mxu0
  %v781 = vpop.f32.mrb[0].mxu0
  %v782 = vpop.f32.mrb[0].mxu0
  %783 = vdwg.mxu0
  %v784 = vmax.f32 %v779, 0.0
  %v785 = vsel %vm196, %v784, 0.0
  %786 = vadd.xlane.f32.xlu0 %v785
  %v787 = vpop.xlane.xlu0 %786
  %v788 = vrcp.pop 32.0
  %v789 = vmul.f32 %v787, %v788
  %v790 = vsub.f32 %v784, %v789
  %v791 = vmul.f32 %v790, %v790
  %v792 = vsel %vm196, %v791, 0.0
  %793 = vadd.xlane.f32.xlu0 %v792
  %v794 = vpop.xlane.xlu0 %793
  %v795 = vmul.f32 %v794, %v788
  %v796 = vadd.f32 %v795, 1e-05
  %v797 = vrsqrt.pop %v796
  %v798 = vmul.f32 %v790, %v797
  %v799 = vpack.c.bf16 %v798, %v798
  %v800 = vld [vmem:[%s7] sm:$0xf]
  %v801 = vld [vmem:[%s7 + $0x4] sm:$0xf]
  %v802 = vld [vmem:[%s7 + $0x8] sm:$0xf]
  %v803 = vld [vmem:[%s7 + $0xc] sm:$0xf]
  %v804 = vld [vmem:[%s8] sm:$0x1]
  %v806 = vlaneseq
  %v807 = vshrl.u32 %v806, 7
  %v808 = vsub.s32 0, %v807
  %v809 = vrot.slane %v804, %v808
  %v815 = vunpack.c.l.b16 %v800
  %v816 = vunpack.c.l.b16 %v801
  %v817 = vunpack.c.l.b16 %v802
  %v818 = vunpack.c.l.b16 %v803
  %v819 = vpack.c.b16 %v816, %v815
  %v820 = vpack.c.b16 %v818, %v817
  %v824 = vsel %vm196, %v799, 0
  %826 = vmatprep.subr.bf16.mxu0 0
  %827 = vmatpush1.bf16.msra.mxu0 %v819
  %828 = vmatprep.subr.bf16.mxu0 0
  %829 = vmatpush1.bf16.msra.mxu0 %v820
  %830 = vmatprep.subr.bf16.mxu0 0
  %831 = vmatpush1.bf16.msra.mxu0 0
  %832 = vmatprep.subr.bf16.mxu0 0
  %833 = vmatpush1.bf16.msra.mxu0 0
  %834 = vmatprep.subr.bf16.mxu0 0
  %835 = vmatpush1.bf16.msra.mxu0 0
  %836 = vmatprep.subr.bf16.mxu0 0
  %837 = vmatpush1.bf16.msra.mxu0 0
  %838 = vmatprep.subr.bf16.mxu0 0
  %839 = vmatpush1.bf16.msra.mxu0 0
  %840 = vmatprep.subr.bf16.mxu0 0
  %841 = vmatpush1.bf16.msra.mxu0 0
  %842 = vmatprep.subr.bf16.mxu0 0
  %843 = vmatpush1.bf16.msra.mxu0 0
  %844 = vmatprep.subr.bf16.mxu0 0
  %845 = vmatpush1.bf16.msra.mxu0 0
  %846 = vmatprep.subr.bf16.mxu0 0
  %847 = vmatpush1.bf16.msra.mxu0 0
  %848 = vmatprep.subr.bf16.mxu0 0
  %849 = vmatpush1.bf16.msra.mxu0 0
  %850 = vmatprep.subr.bf16.mxu0 0
  %851 = vmatpush1.bf16.msra.mxu0 0
  %852 = vmatprep.subr.bf16.mxu0 0
  %853 = vmatpush1.bf16.msra.mxu0 0
  %854 = vmatprep.subr.bf16.mxu0 0
  %855 = vmatpush1.bf16.msra.mxu0 0
  %856 = vmatprep.subr.bf16.mxu0 0
  %857 = vmatpush1.bf16.msra.mxu0 0
  %858 = vmatprep.mubr.bf16.mxu0 0
  %859 = vmatmul.mubr.bf16.gmra.mrb[0].mxu0 %v824
  %v860 = vpop.f32.mrb[0].mxu0
  %v861 = vadd.f32 %v809, %v860
  %v862 = vpop.f32.mrb[0].mxu0
  %v863 = vpop.f32.mrb[0].mxu0
  %v864 = vpop.f32.mrb[0].mxu0
  %865 = vdwg.mxu0
  %v866 = vmax.f32 %v861, 0.0
  %v867 = vsel %vm196, %v866, 0.0
  %868 = vadd.xlane.f32.xlu0 %v867
  %v869 = vpop.xlane.xlu0 %868
  %v870 = vmul.f32 %v869, %v788
  %v871 = vsub.f32 %v866, %v870
  %v872 = vmul.f32 %v871, %v871
  %v873 = vsel %vm196, %v872, 0.0
  %874 = vadd.xlane.f32.xlu0 %v873
  %v875 = vpop.xlane.xlu0 %874
  %v876 = vmul.f32 %v875, %v788
  %v877 = vadd.f32 %v876, 1e-05
  %v878 = vrsqrt.pop %v877
  %v879 = vmul.f32 %v871, %v878
  %v880 = vpack.c.bf16 %v879, %v879
  %s881 = scalar_lea.vmem %s7, 16
  %v882 = vld [vmem:[%s881] sm:$0xf]
  %v883 = vld [vmem:[%s881 + $0x4] sm:$0xf]
  %v884 = vld [vmem:[%s881 + $0x8] sm:$0xf]
  %v885 = vld [vmem:[%s881 + $0xc] sm:$0xf]
  %s886 = scalar_lea.vmem %s8, 1
  %v887 = vld [vmem:[%s886] sm:$0x1]
  %v889 = vlaneseq
  %v890 = vshrl.u32 %v889, 7
  %v891 = vsub.s32 0, %v890
  %v892 = vrot.slane %v887, %v891
  %v898 = vunpack.c.l.b16 %v882
  %v899 = vunpack.c.l.b16 %v883
  %v900 = vunpack.c.l.b16 %v884
  %v901 = vunpack.c.l.b16 %v885
  %v902 = vpack.c.b16 %v899, %v898
  %v903 = vpack.c.b16 %v901, %v900
  %v907 = vsel %vm196, %v880, 0
  %909 = vmatprep.subr.bf16.mxu0 0
  %910 = vmatpush1.bf16.msra.mxu0 %v902
  %911 = vmatprep.subr.bf16.mxu0 0
  %912 = vmatpush1.bf16.msra.mxu0 %v903
  %913 = vmatprep.subr.bf16.mxu0 0
  %914 = vmatpush1.bf16.msra.mxu0 0
  %915 = vmatprep.subr.bf16.mxu0 0
  %916 = vmatpush1.bf16.msra.mxu0 0
  %917 = vmatprep.subr.bf16.mxu0 0
  %918 = vmatpush1.bf16.msra.mxu0 0
  %919 = vmatprep.subr.bf16.mxu0 0
  %920 = vmatpush1.bf16.msra.mxu0 0
  %921 = vmatprep.subr.bf16.mxu0 0
  %922 = vmatpush1.bf16.msra.mxu0 0
  %923 = vmatprep.subr.bf16.mxu0 0
  %924 = vmatpush1.bf16.msra.mxu0 0
  %925 = vmatprep.subr.bf16.mxu0 0
  %926 = vmatpush1.bf16.msra.mxu0 0
  %927 = vmatprep.subr.bf16.mxu0 0
  %928 = vmatpush1.bf16.msra.mxu0 0
  %929 = vmatprep.subr.bf16.mxu0 0
  %930 = vmatpush1.bf16.msra.mxu0 0
  %931 = vmatprep.subr.bf16.mxu0 0
  %932 = vmatpush1.bf16.msra.mxu0 0
  %933 = vmatprep.subr.bf16.mxu0 0
  %934 = vmatpush1.bf16.msra.mxu0 0
  %935 = vmatprep.subr.bf16.mxu0 0
  %936 = vmatpush1.bf16.msra.mxu0 0
  %937 = vmatprep.subr.bf16.mxu0 0
  %938 = vmatpush1.bf16.msra.mxu0 0
  %939 = vmatprep.subr.bf16.mxu0 0
  %940 = vmatpush1.bf16.msra.mxu0 0
  %941 = vmatprep.mubr.bf16.mxu0 0
  %942 = vmatmul.mubr.bf16.gmra.mrb[0].mxu0 %v907
  %v943 = vpop.f32.mrb[0].mxu0
  %v944 = vadd.f32 %v892, %v943
  %v945 = vpop.f32.mrb[0].mxu0
  %v946 = vpop.f32.mrb[0].mxu0
  %v947 = vpop.f32.mrb[0].mxu0
  %948 = vdwg.mxu0
  %v949 = vmax.f32 %v944, 0.0
  %v950 = vpack.c.bf16 %v949, %v949
  %v951 = vld [vmem:[%s9] sm:$0xf]
  %v952 = vld [vmem:[%s9 + $0x4] sm:$0xf]
  %v953 = vld [vmem:[%s9 + $0x8] sm:$0xf]
  %v954 = vld [vmem:[%s9 + $0xc] sm:$0xf]
  %v955 = vld [vmem:[%s10] sm:$0x1]
  %v957 = vlaneseq
  %v958 = vshrl.u32 %v957, 7
  %v959 = vsub.s32 0, %v958
  %v960 = vrot.slane %v955, %v959
  %v966 = vunpack.c.l.b16 %v951
  %v967 = vunpack.c.l.b16 %v952
  %v968 = vunpack.c.l.b16 %v953
  %v969 = vunpack.c.l.b16 %v954
  %v970 = vpack.c.b16 %v967, %v966
  %v971 = vpack.c.b16 %v969, %v968
  %v975 = vsel %vm196, %v950, 0
  %977 = vmatprep.subr.bf16.mxu0 0
  %978 = vmatpush1.bf16.msra.mxu0 %v970
  %979 = vmatprep.subr.bf16.mxu0 0
  %980 = vmatpush1.bf16.msra.mxu0 %v971
  %981 = vmatprep.subr.bf16.mxu0 0
  %982 = vmatpush1.bf16.msra.mxu0 0
  %983 = vmatprep.subr.bf16.mxu0 0
  %984 = vmatpush1.bf16.msra.mxu0 0
  %985 = vmatprep.subr.bf16.mxu0 0
  %986 = vmatpush1.bf16.msra.mxu0 0
  %987 = vmatprep.subr.bf16.mxu0 0
  %988 = vmatpush1.bf16.msra.mxu0 0
  %989 = vmatprep.subr.bf16.mxu0 0
  %990 = vmatpush1.bf16.msra.mxu0 0
  %991 = vmatprep.subr.bf16.mxu0 0
  %992 = vmatpush1.bf16.msra.mxu0 0
  %993 = vmatprep.subr.bf16.mxu0 0
  %994 = vmatpush1.bf16.msra.mxu0 0
  %995 = vmatprep.subr.bf16.mxu0 0
  %996 = vmatpush1.bf16.msra.mxu0 0
  %997 = vmatprep.subr.bf16.mxu0 0
  %998 = vmatpush1.bf16.msra.mxu0 0
  %999 = vmatprep.subr.bf16.mxu0 0
  %1000 = vmatpush1.bf16.msra.mxu0 0
  %1001 = vmatprep.subr.bf16.mxu0 0
  %1002 = vmatpush1.bf16.msra.mxu0 0
  %1003 = vmatprep.subr.bf16.mxu0 0
  %1004 = vmatpush1.bf16.msra.mxu0 0
  %1005 = vmatprep.subr.bf16.mxu0 0
  %1006 = vmatpush1.bf16.msra.mxu0 0
  %1007 = vmatprep.subr.bf16.mxu0 0
  %1008 = vmatpush1.bf16.msra.mxu0 0
  %1009 = vmatprep.mubr.bf16.mxu0 0
  %1010 = vmatmul.mubr.bf16.gmra.mrb[0].mxu0 %v975
  %v1011 = vpop.f32.mrb[0].mxu0
  %v1012 = vadd.f32 %v960, %v1011
  %v1013 = vpop.f32.mrb[0].mxu0
  %v1014 = vpop.f32.mrb[0].mxu0
  %v1015 = vpop.f32.mrb[0].mxu0
  %1016 = vdwg.mxu0
  %1017 = vst [vmem:[%s11] sm:$0xff] %v1012
  // Predicated region
  $region46: #{forward.1} parent=0 // pred_check
    _
  $region47: #{forward.1} parent=0 // pred_check_branch
    %1019 = sbr.rel (0) target = $region49
  $region48: #{forward.1} parent=0 // pred_region
    _
  $region49: #{forward.1} parent=0 // pred_fallthru
    _
  // Predicated region
  $region50: #{forward.1} parent=0 // pred_check
    _
  $region51: #{forward.1} parent=0 // pred_check_branch
    %1021 = sbr.rel (0) target = $region53
  $region52: #{forward.1} parent=0 // pred_region
    _
  $region53: #{forward.1} parent=0 // pred_fallthru
    _

</llo_original>
